<compile_context>
chip_gen: v7x
topology: tpu7x:2x2x1
jax: 0.10.0
libtpu: 0.0.40
codegen_flags: <defaults>
</compile_context>

<pallas_src>
import jax
import jax.numpy as jnp
from jax.experimental import pallas as pl
from jax.experimental.pallas import tpu as pltpu


def _round_up(n, m):
    return ((n + m - 1) // m) * m


def _vmem_capacity_bytes():
    """Physical VMEM per TensorCore; conservative (v7x, 64 MiB) fallback."""
    try:
        cap = getattr(pltpu.get_tpu_info(), "vmem_capacity_bytes", None)
        if cap:
            return int(cap)
    except Exception:
        pass
    return 64 << 20


def _make_euler_kernel(use_folded, col_tiled, tn):
    """use_folded:  o = x @ (I + dt*W^T) + dt*b          (single f32 GEMM)
       otherwise:   o = x + x @ (dt*W^T) + dt*b          (f32 residual/accum,
                                                          narrow MXU/stream)."""

    def kernel(x_ref, w_ref, b_ref, o_ref):
        x = x_ref[...]
        w = w_ref[...]
        acc = jnp.dot(x.astype(w.dtype), w, preferred_element_type=jnp.float32)
        if not use_folded:
            if col_tiled:
                start = pl.multiple_of(pl.program_id(1) * tn, tn)
                x_res = x_ref[:, pl.ds(start, tn)]
            else:
                x_res = x
            acc = acc + x_res.astype(jnp.float32)
        o_ref[...] = (acc + b_ref[...]).astype(o_ref.dtype)

    return kernel


def fold_euler_params(w, b, t, *, x_dtype, matmul_dtype=None):
    """Pre-fold the Euler step.  O(D^2): compute once per layer and reuse across
    calls (or jit the caller so XLA hoists/fuses it with surrounding ops)."""
    t32 = t.astype(jnp.float32)
    dt = t32[1] - t32[0]                       # step size always in f32
    w32 = w.astype(jnp.float32)
    b_eff = (dt * b.astype(jnp.float32)).reshape(1, -1)

    if matmul_dtype is None:
        matmul_dtype = (jnp.float32 if jnp.dtype(x_dtype) == jnp.dtype(jnp.float32)
                        else jnp.bfloat16)
    matmul_dtype = jnp.dtype(matmul_dtype)

    # Fold the identity into W only when everything stays f32; otherwise keep
    # the residual add in f32 inside the kernel (axpy path) so a narrow MXU /
    # stream dtype never quantizes the identity diagonal.
    use_folded = (matmul_dtype == jnp.dtype(jnp.float32)
                  and jnp.dtype(x_dtype) == jnp.dtype(jnp.float32))
    if use_folded:
        d = w.shape[0]
        w_eff = jnp.eye(d, dtype=jnp.float32) + dt * w32.T
    else:
        w_eff = (dt * w32.T).astype(matmul_dtype)
    return w_eff, b_eff, use_folded


def odeblock_apply(x, w_eff, b_eff, *, use_folded, tile_m=None):
    N, D = x.shape
    out_dtype = x.dtype
    x_item = jnp.dtype(x.dtype).itemsize
    out_item = jnp.dtype(out_dtype).itemsize
    w_item = jnp.dtype(w_eff.dtype).itemsize

    cap = _vmem_capacity_bytes()
    budget = max(cap - (16 << 20), cap // 2)   # headroom for Mosaic scratch

    # Row-tile default by generation: bigger tiles on 128 MiB parts (v5e/v6e)
    # amortize the per-step grid overhead; 256 on v7x's 64 MiB.
    if tile_m is None:
        tile_m = (1024 if D <= 512 else 512) if cap >= (96 << 20) else 256

    # Column-tile the weight only when a resident D x D would blow the budget
    # (counted double-buffered to be safe); tn must be lane-dense and divide D
    # so in-kernel residual slices never go out of bounds.
    tn = D
    col_tiled = (2 * D * D * w_item + 2 * D * 4) > int(0.6 * budget)
    if col_tiled:
        for cand in (1024, 512, 256, 128):
            if cand < D and D % cand == 0:
                tn = cand
                break
        else:
            col_tiled = False  # TODO(synk): ragged-D fallback keeps W resident
    n_cols = pl.cdiv(D, tn)

    # Sublane packing: 8 (f32) / 16 (bf16) / 32 (int8, fp8) rows per vreg.
    row_pack = max(8, 32 // min(x_item, out_item))

    # >= 2 and even row tiles so the x/o DMAs pipeline and both v7x TCs stream.
    n_rows = max(1, pl.cdiv(N, tile_m))
    if N > row_pack:
        n_rows = max(2, n_rows)
        n_rows += n_rows % 2
    tm = min(_round_up(pl.cdiv(N, n_rows), row_pack), _round_up(N, row_pack))

    def footprint(tm_):
        io = 2 * tm_ * D * x_item + 2 * tm_ * tn * out_item
        wgt = (2 * D * tn * w_item + 2 * tn * 4) if col_tiled \
            else (2 * D * D * w_item + 2 * D * 4)      # conservative 2x
        return io + wgt

    while footprint(tm) > budget and tm > row_pack:
        tm = max(row_pack, _round_up(tm // 2, row_pack))
    n_rows = pl.cdiv(N, tm)

    # Never clamp the limit below the actual requirement.
    vmem_limit = min(budget, max(32 << 20, footprint(tm) + (8 << 20)))
    vmem_limit = int(max(vmem_limit, footprint(tm) + (2 << 20)))

    if col_tiled:
        w_spec = pl.BlockSpec((D, tn), lambda i, j: (0, j))
        b_spec = pl.BlockSpec((1, tn), lambda i, j: (0, j))
    else:
        # Whole-array VMEM residency: copied in once, no per-step re-buffering.
        w_spec = pl.BlockSpec(memory_space=pltpu.MemorySpace.VMEM)
        b_spec = pl.BlockSpec(memory_space=pltpu.MemorySpace.VMEM)

    cost = pl.CostEstimate(
        flops=2 * N * D * D,
        transcendentals=0,
        bytes_accessed=N * D * (x_item + out_item) + D * D * w_item + 4 * D)

    kernel = _make_euler_kernel(use_folded, col_tiled, tn)

    return pl.pallas_call(
        kernel,
        out_shape=jax.ShapeDtypeStruct((N, D), out_dtype),
        grid=(n_rows, n_cols),
        in_specs=[
            pl.BlockSpec((tm, D), lambda i, j: (i, 0)),   # x row tiles, pipelined
            w_spec,                                       # W_eff / dt*W^T
            b_spec,                                       # dt*b (f32)
        ],
        out_specs=pl.BlockSpec((tm, tn), lambda i, j: (i, j)),
        compiler_params=pltpu.CompilerParams(
            dimension_semantics=("parallel", "parallel"),
            vmem_limit_bytes=vmem_limit,
        ),
        cost_estimate=cost,
    )(x, w_eff, b_eff)


def odeblock_forward(x, w, b, t, *, tile_m=None, matmul_dtype=None):
    """z = odeint(f, x, t, method='euler')[1] with f(t, x) = x @ W.T + b.

    Streams x / out in x.dtype (pass bf16 x for ~2x less HBM traffic on
    v6e/v7x); matmul_dtype overrides the MXU input dtype.  The f32 folded
    single-GEMM path is the default for f32 inputs (preferred on v5e)."""
    w_eff, b_eff, use_folded = fold_euler_params(
        w, b, t, x_dtype=x.dtype, matmul_dtype=matmul_dtype)
    return odeblock_apply(x, w_eff, b_eff, use_folded=use_folded, tile_m=tile_m)


def odeblock_reference(x, w, b, t):
    """Pure-JAX reference of the same Euler step (f32 math, f32 step size)."""
    t32 = t.astype(jnp.float32)
    dt = t32[1] - t32[0]
    xf = x.astype(jnp.float32)
    f = xf @ w.astype(jnp.float32).T + b.astype(jnp.float32)
    return xf + dt * f


if __name__ == "__main__":
    key = jax.random.PRNGKey(0)
    kx, kw, kb = jax.random.split(key, 3)

    # nodes x hidden features; N deliberately not a tile multiple (exercises the
    # masked ragged last row tile) and > one tile (exercises the 2-tile
    # "parallel" pipelined row grid).
    N, D = 200, 128
    x = jax.random.normal(kx, (N, D), dtype=jnp.float32)
    w = jax.random.normal(kw, (D, D), dtype=jnp.float32) * (1.0 / jnp.sqrt(D))
    b = jax.random.normal(kb, (D,), dtype=jnp.float32) * 0.01
    t = jnp.array([0.0, 1.0], dtype=jnp.float32)   # self.t = torch.tensor([0, 1])

    z_ref = odeblock_reference(x, w, b, t)

    # f32 folded single-GEMM path (default; jit fuses the W_eff/b_eff fold).
    fwd = jax.jit(odeblock_forward)
    z = jax.block_until_ready(fwd(x, w, b, t))
    assert z.shape == (N, D) and z.dtype == x.dtype
    assert jnp.allclose(z, z_ref, atol=1e-4, rtol=1e-4), "f32 folded path mismatch"

    # bf16 end-to-end streaming (halves x/o HBM bytes; f32 residual in-kernel).
    xb = x.astype(jnp.bfloat16)
    z_bf16 = jax.block_until_ready(odeblock_forward(xb, w, b, t))
    assert z_bf16.shape == (N, D) and z_bf16.dtype == jnp.bfloat16
    assert jnp.allclose(z_bf16.astype(jnp.float32), z_ref, atol=7e-2, rtol=7e-2), \
        "bf16 streaming path mismatch"

    # f32 streams + bf16 MXU correction (axpy path, f32 residual/accumulator).
    z_mx = jax.block_until_ready(
        odeblock_forward(x, w, b, t, matmul_dtype=jnp.bfloat16))
    assert z_mx.shape == (N, D) and z_mx.dtype == x.dtype
    assert jnp.allclose(z_mx, z_ref, atol=5e-2, rtol=5e-2), "bf16-MXU path mismatch"

    print("KERNEL_OK")
</pallas_src>

<mosaic_0001>
module attributes {stable_mosaic.version = 11 : i64} {
  func.func @kernel(%arg0: i32, %arg1: i32, %arg2: memref<104x128xf32, #tpu.memory_space<vmem>>, %arg3: memref<128x128xf32, #tpu.memory_space<vmem>>, %arg4: memref<1x128xf32, #tpu.memory_space<vmem>>, %arg5: memref<104x128xf32, #tpu.memory_space<vmem>>) attributes {dimension_semantics = [#tpu.dimension_semantics<parallel>, #tpu.dimension_semantics<parallel>], iteration_bounds = array<i64: 2, 1>, scalar_prefetch = 0 : i64, scratch_operands = 0 : i64, tpu.core_type = #tpu.core_type<tc>, window_params = [{transform_indices = @transform_0, window_bounds = array<i64: 104, 128>}, {pipeline_mode = #tpu.pipeline_mode<synchronous>, transform_indices = @transform_1, window_bounds = array<i64: 128, 128>}, {pipeline_mode = #tpu.pipeline_mode<synchronous>, transform_indices = @transform_2, window_bounds = array<i64: 1, 128>}, {transform_indices = @transform_3, window_bounds = array<i64: 104, 128>}]} {
    %c0 = arith.constant 0 : index
    %c0_0 = arith.constant 0 : index
    %0 = vector.load %arg2[%c0, %c0_0] : memref<104x128xf32, #tpu.memory_space<vmem>>, vector<104x128xf32>
    %c0_1 = arith.constant 0 : index
    %c0_2 = arith.constant 0 : index
    %1 = vector.load %arg3[%c0_1, %c0_2] : memref<128x128xf32, #tpu.memory_space<vmem>>, vector<128x128xf32>
    %cst = arith.constant dense<0.000000e+00> : vector<104x128xf32>
    %2 = tpu.matmul %0, %1, %cst {dimension_numbers = #tpu.dot_dimension_numbers<[1], [0], [0], [1], [0, 0, 1, 1], [], []>} : vector<104x128xf32>, vector<128x128xf32>, vector<104x128xf32> -> vector<104x128xf32>
    %c0_3 = arith.constant 0 : index
    %c0_4 = arith.constant 0 : index
    %3 = vector.load %arg4[%c0_3, %c0_4] : memref<1x128xf32, #tpu.memory_space<vmem>>, vector<1x128xf32>
    %4 = vector.broadcast %3 : vector<1x128xf32> to vector<104x128xf32>
    %5 = arith.addf %2, %4 : vector<104x128xf32>
    %c0_5 = arith.constant 0 : index
    %c0_6 = arith.constant 0 : index
    %6 = vector.load %arg5[%c0_5, %c0_6] : memref<104x128xf32, #tpu.memory_space<vmem>>, vector<104x128xf32>
    tpu.vector_store %arg5[%c0_5, %c0_6], %5 {strides = array<i32>} : memref<104x128xf32, #tpu.memory_space<vmem>>, vector<104x128xf32>,
    return
  }
  func.func @transform_0(%arg0: i32, %arg1: i32) -> (i32, i32) {
    %c0_i32 = arith.constant 0 : i32
    %c0_i32_0 = arith.constant 0 : i32
    return %arg0, %c0_i32 : i32, i32
  }
  func.func @transform_1(%arg0: i32, %arg1: i32) -> (i32, i32) {
    %c0_i32 = arith.constant 0 : i32
    %c0_i32_0 = arith.constant 0 : i32
    %c0_i32_1 = arith.constant 0 : i32
    return %c0_i32, %c0_i32_0 : i32, i32
  }
  func.func @transform_2(%arg0: i32, %arg1: i32) -> (i32, i32) {
    %c0_i32 = arith.constant 0 : i32
    %c0_i32_0 = arith.constant 0 : i32
    %c0_i32_1 = arith.constant 0 : i32
    return %c0_i32, %c0_i32_0 : i32, i32
  }
  func.func @transform_3(%arg0: i32, %arg1: i32) -> (i32, i32) {
    %c0_i32 = arith.constant 0 : i32
    return %arg0, %arg1 : i32, i32
  }
}

</mosaic_0001>

<llo_original>
// kernel: odeblock_forward.1
$region0: #{odeblock_forward.1}
  #allocation0 [shape = 'u32[]', space=smem, size = 0x4, offset = 0x4, fixed_abs, tag = 'smem constant byte address 0x4 - core index']
  #allocation1 [shape = 'u32[144,128]{1,0:T(1,128)}', space=vmem, size = 0x12000, scoped, tag = 'internal scratch']
  %s0 = inlined_call_operand.vmem [shape: f32[200,128], index: 0, kind: input, shape index: {}]
  %s1 = inlined_call_operand.vmem [shape: f32[128,128], index: 1, kind: input, shape index: {}]
  %s2 = inlined_call_operand.vmem [shape: f32[1,128], index: 2, kind: input, shape index: {}]
  %s3 = inlined_call_operand.hbm [shape: f32[200,128], index: 3, kind: output, shape index: {}]
  %s4 = sld [smem:[#allocation0]]
  $region45: #{odeblock_forward.1} parent=0
    _
  %s6 = ssub.s32 1, %s4
  %s7 = scalar_select 0, %s6, %s4
  $region1: #{odeblock_forward.1} parent=0
    #allocation2 [shape = 'u8[106496]{0}', space=vmem, size = 0x1a000, scoped, tag = 'output window, operand 0']
    #allocation3 [shape = 's32[2]{0}', space=sflag, size = 0x8, scoped, tag = 'scoped memory for odeblock_forward.1']
    %8 = vsyncpa [#allocation3], 0
    %s9 = scalar_lea.sflag [#allocation3], 1
    %10 = vsyncpa %s9, 0
    loop: start=0, step=1, limit=4
    $region2: #{odeblock_forward.1} parent=1 // loop_pre_header
      _
    $region3: #{odeblock_forward.1} parent=1 // loop_header
      %s12 = sphi 0, %s16
      %p13 = scmp.ge.s32.totalorder %s12, 4
      %s19 = sphi 0, %s31
      %s20 = sphi 0, %s27
      %s21 = sphi 0, %s19
      %s22 = sphi 0, %s20
      %s23 = sphi 0, %s21
      %s24 = sphi 0, %s22
      %s34 = sphi 0, %s36
      %s37 = sphi 0, %s34
      %s38 = sphi 0, %s37
      %s54 = sphi 0, %s38
      %s58 = sphi 0, %s58
      %s60 = sphi 0, %s58
      %s61 = sphi 0, %s60
      %s75 = sphi 0, %s61
      %s79 = sphi 0, %s79
      %s81 = sphi 0, %s79
      %s82 = sphi 0, %s81
      %s96 = sphi 0, %s82
      %s104 = sphi 0, %s106
      %s107 = sphi 0, %s104
      %s108 = sphi 0, %s107
      %s124 = sphi 0, %s108
    $region4: #{odeblock_forward.1} parent=1 // loop_header_branch
      %15 = sbr.rel (%p13) target = $region8
    $region5: #{odeblock_forward.1} parent=1 // loop_body
      %s17 = ssub.s32 %s12, 1
      %s18 = ssub.s32 %s12, 2
      %s25 = sadd.s32 1, %s20
      %p26 = scmp.ge.s32.totalorder %s25, 1
      %s27 = scalar_select %p26, 0, %s25
      %s28 = sadd.s32 1, %s19
      %s29 = scalar_select %p26, %s28, %s19
      %p30 = scmp.ge.s32.totalorder %s29, 2
      %s31 = scalar_select %p30, 0, %s29
      %s32 = ssub.s32 %s19, %s31
      %p33 = scmp.eq.s32.totalorder %s32, 0
      %s35 = sadd.s32 %s34, 1
      %s36 = scalar_select %p33, %s34, %s35
      %p39 = pneg %p33
      %p40 = scmp.eq.s32.totalorder %s12, 1
      %p41 = por %p39, %p40
      %p42 = scmp.ne.s32.totalorder %s34, %s37
      %p43 = scmp.eq.s32.totalorder %s12, 0
      %p44 = por %p42, %p43
      %p45 = scmp.ne.s32.totalorder %s34, %s37
      %p46 = scmp.eq.s32.totalorder %s17, 1
      %p47 = por %p45, %p46
      %p48 = scmp.ne.s32.totalorder %s37, %s38
      %p49 = scmp.eq.s32.totalorder %s17, 0
      %p50 = por %p48, %p49
      %p51 = scmp.ne.s32.totalorder %s37, %s38
      %p52 = scmp.eq.s32.totalorder %s18, 1
      %p53 = por %p51, %p52
      %p55 = scmp.ne.s32.totalorder %s38, %s54
      %p56 = scmp.eq.s32.totalorder %s18, 0
      %p57 = por %p55, %p56
      %s59 = sadd.s32 %s58, 1
      %p62 = scmp.eq.s32.totalorder %s12, 1
      %p63 = scmp.ne.s32.totalorder %s58, %s60
      %p64 = scmp.eq.s32.totalorder %s12, 0
      %p65 = por %p63, %p64
      %p66 = scmp.ne.s32.totalorder %s58, %s60
      %p67 = scmp.eq.s32.totalorder %s17, 1
      %p68 = por %p66, %p67
      %p69 = scmp.ne.s32.totalorder %s60, %s61
      %p70 = scmp.eq.s32.totalorder %s17, 0
      %p71 = por %p69, %p70
      %p72 = scmp.ne.s32.totalorder %s60, %s61
      %p73 = scmp.eq.s32.totalorder %s18, 1
      %p74 = por %p72, %p73
      %p76 = scmp.ne.s32.totalorder %s61, %s75
      %p77 = scmp.eq.s32.totalorder %s18, 0
      %p78 = por %p76, %p77
      %s80 = sadd.s32 %s79, 1
      %p83 = scmp.eq.s32.totalorder %s12, 1
      %p84 = scmp.ne.s32.totalorder %s79, %s81
      %p85 = scmp.eq.s32.totalorder %s12, 0
      %p86 = por %p84, %p85
      %p87 = scmp.ne.s32.totalorder %s79, %s81
      %p88 = scmp.eq.s32.totalorder %s17, 1
      %p89 = por %p87, %p88
      %p90 = scmp.ne.s32.totalorder %s81, %s82
      %p91 = scmp.eq.s32.totalorder %s17, 0
      %p92 = por %p90, %p91
      %p93 = scmp.ne.s32.totalorder %s81, %s82
      %p94 = scmp.eq.s32.totalorder %s18, 1
      %p95 = por %p93, %p94
      %p97 = scmp.ne.s32.totalorder %s82, %s96
      %p98 = scmp.eq.s32.totalorder %s18, 0
      %p99 = por %p97, %p98
      %s100 = ssub.s32 %s19, %s31
      %s101 = ssub.s32 %s20, %s27
      %s102 = sor.u32 %s100, %s101
      %p103 = scmp.eq.s32.totalorder %s102, 0
      %s105 = sadd.s32 %s104, 1
      %s106 = scalar_select %p103, %s104, %s105
      %p109 = pneg %p103
      %p110 = scmp.eq.s32.totalorder %s12, 1
      %p111 = por %p109, %p110
      %p112 = scmp.ne.s32.totalorder %s104, %s107
      %p113 = scmp.eq.s32.totalorder %s12, 0
      %p114 = por %p112, %p113
      %p115 = scmp.ne.s32.totalorder %s104, %s107
      %p116 = scmp.eq.s32.totalorder %s17, 1
      %p117 = por %p115, %p116
      %p118 = scmp.ne.s32.totalorder %s107, %s108
      %p119 = scmp.eq.s32.totalorder %s17, 0
      %p120 = por %p118, %p119
      %p121 = scmp.ne.s32.totalorder %s107, %s108
      %p122 = scmp.eq.s32.totalorder %s18, 1
      %p123 = por %p121, %p122
      %p125 = scmp.ne.s32.totalorder %s108, %s124
      %p126 = scmp.eq.s32.totalorder %s18, 0
      %p127 = por %p125, %p126
      %p128 = scmp.le.s32.totalorder 1, %s12
      %p129 = scmp.lt.s32.totalorder %s12, 3
      %p130 = pnand %p128, %p129
      %p131 = pneg %p130
      // Predicated region
      $region9: #{odeblock_forward.1} parent=5 // pred_check
        _
      $region10: #{odeblock_forward.1} parent=5 // pred_check_branch
        %133 = sbr.rel (%p130) target = $region12
      $region11: #{odeblock_forward.1} parent=5 // pred_region
        %s134 = ssub.s32 %s12, 1
        // Predicated region
        $region13: #{odeblock_forward.1} parent=11 // pred_check
          %p135 = pneg %p71
        $region14: #{odeblock_forward.1} parent=11 // pred_check_branch
          %137 = sbr.rel (%p135) target = $region16
        $region15: #{odeblock_forward.1} parent=11 // pred_region
          _
        $region16: #{odeblock_forward.1} parent=11 // pred_fallthru
          _
        // Predicated region
        $region17: #{odeblock_forward.1} parent=11 // pred_check
          %p138 = pneg %p92
        $region18: #{odeblock_forward.1} parent=11 // pred_check_branch
          %140 = sbr.rel (%p138) target = $region20
        $region19: #{odeblock_forward.1} parent=11 // pred_region
          _
        $region20: #{odeblock_forward.1} parent=11 // pred_fallthru
          _
      $region12: #{odeblock_forward.1} parent=5 // pred_fallthru
        _
      %p141 = scmp.lt.s32.totalorder %s12, 2
      // Predicated region
      $region21: #{odeblock_forward.1} parent=5 // pred_check
        %p142 = pneg %p141
      $region22: #{odeblock_forward.1} parent=5 // pred_check_branch
        %144 = sbr.rel (%p142) target = $region24
      $region23: #{odeblock_forward.1} parent=5 // pred_region
        // Predicated region
        $region25: #{odeblock_forward.1} parent=23 // pred_check
          %p145 = pneg %p44
        $region26: #{odeblock_forward.1} parent=23 // pred_check_branch
          %147 = sbr.rel (%p145) target = $region28
        $region27: #{odeblock_forward.1} parent=23 // pred_region
          %s148 = smul.u32 13, %s19
          %s149 = ssub.s32 25, %s148
          %p150 = scmp.lt.s32.totalorder %s149, 13
          %s151 = scalar_select %p150, %s149, 13
          %s152 = smul.u32 128, %s151
          %p153 = scmp.lt.s32.totalorder %s148, 24
          %s154 = scalar_select %p153, %s148, 24
          %s155 = smul.addr %s154, 8
          %s156 = scalar_lea.vmem %s0, %s155
          %s157 = smul.u32 13, %s19
          %s158 = ssub.s32 25, %s157
          %p159 = scmp.lt.s32.totalorder %s158, 13
          %s160 = scalar_select %p159, %s158, 13
          %s161 = smul.u32 128, %s160
        $region28: #{odeblock_forward.1} parent=23 // pred_fallthru
          _
      $region24: #{odeblock_forward.1} parent=5 // pred_fallthru
        _
      %p162 = scmp.le.s32.totalorder 1, %s12
      %p163 = scmp.lt.s32.totalorder %s12, 3
      %p164 = pnand %p162, %p163
      %p165 = pneg %p164
      // Predicated region
      $region29: #{odeblock_forward.1} parent=5 // pred_check
        _
      $region30: #{odeblock_forward.1} parent=5 // pred_check_branch
        %167 = sbr.rel (%p164) target = $region32
      $region31: #{odeblock_forward.1} parent=5 // pred_region
        %s168 = ssub.s32 %s12, 1
        %s169 = smul.u32 13, %s21
        %s170 = ssub.s32 25, %s169
        %p171 = scmp.lt.s32.totalorder %s170, 13
        %s172 = scalar_select %p171, %s170, 13
        %s173 = smul.u32 128, %s172
        %p174 = scmp.lt.s32.totalorder %s169, 24
        %s175 = scalar_select %p174, %s169, 24
        %s176 = smul.addr %s175, 8
        %s177 = scalar_lea.vmem %s0, %s176
        %p178 = pneg %p50
        %p179 = pneg %p47
        %p180 = pneg %p71
        %p181 = pneg %p68
        %p182 = pneg %p92
        %p183 = pneg %p89
        %p184 = pneg %p120
        %p185 = pneg %p117
        %s186 = sand.u32 %s107, 1
        %s187 = scalar_lea.sflag [#allocation3], %s186
        %s188 = sand.u32 %s107, 1
        %s189 = smul.addr %s188, 104
        %s190 = scalar_lea.vmem [#allocation2], %s189
        %s191 = smul.u32 13, %s21
        %s192 = ssub.s32 25, %s191
        %p193 = scmp.lt.s32.totalorder %s192, 13
        %s194 = scalar_select %p193, %s192, 13
        %s195 = smul.u32 128, %s194
        %p196 = scmp.lt.s32.totalorder %s191, 24
        %s197 = scalar_select %p196, %s191, 24
        %s198 = smul.addr %s197, 8
        %s199 = scalar_lea.vmem %s0, %s198
        %s200 = smul.u32 13, %s21
        %s201 = ssub.s32 25, %s200
        %p202 = scmp.lt.s32.totalorder %s201, 13
        %s203 = scalar_select %p202, %s201, 13
        %s204 = smul.u32 128, %s203
        %s205 = smul.u32 13, %s21
        %s206 = ssub.s32 25, %s205
        %p207 = scmp.lt.s32.totalorder %s206, 13
        %s208 = scalar_select %p207, %s206, 13
        %s209 = smul.u32 128, %s208
        %v210 = vld [vmem:[%s199] sm:$0xff]
        %v211 = vld [vmem:[%s199 + $0x8] sm:$0xff]
        %v212 = vld [vmem:[%s199 + $0x10] sm:$0xff]
        %v213 = vld [vmem:[%s199 + $0x18] sm:$0xff]
        %v214 = vld [vmem:[%s199 + $0x20] sm:$0xff]
        %v215 = vld [vmem:[%s199 + $0x28] sm:$0xff]
        %v216 = vld [vmem:[%s199 + $0x30] sm:$0xff]
        %v217 = vld [vmem:[%s199 + $0x38] sm:$0xff]
        %v218 = vld [vmem:[%s199 + $0x40] sm:$0xff]
        %v219 = vld [vmem:[%s199 + $0x48] sm:$0xff]
        %v220 = vld [vmem:[%s199 + $0x50] sm:$0xff]
        %v221 = vld [vmem:[%s199 + $0x58] sm:$0xff]
        %v222 = vld [vmem:[%s199 + $0x60] sm:$0xff]
        %v223 = vld [vmem:[%s1] sm:$0xff]
        %v224 = vld [vmem:[%s1 + $0x8] sm:$0xff]
        %v225 = vld [vmem:[%s1 + $0x10] sm:$0xff]
        %v226 = vld [vmem:[%s1 + $0x18] sm:$0xff]
        %v227 = vld [vmem:[%s1 + $0x20] sm:$0xff]
        %v228 = vld [vmem:[%s1 + $0x28] sm:$0xff]
        %v229 = vld [vmem:[%s1 + $0x30] sm:$0xff]
        %v230 = vld [vmem:[%s1 + $0x38] sm:$0xff]
        %v231 = vld [vmem:[%s1 + $0x40] sm:$0xff]
        %v232 = vld [vmem:[%s1 + $0x48] sm:$0xff]
        %v233 = vld [vmem:[%s1 + $0x50] sm:$0xff]
        %v234 = vld [vmem:[%s1 + $0x58] sm:$0xff]
        %v235 = vld [vmem:[%s1 + $0x60] sm:$0xff]
        %v236 = vld [vmem:[%s1 + $0x68] sm:$0xff]
        %v237 = vld [vmem:[%s1 + $0x70] sm:$0xff]
        %v238 = vld [vmem:[%s1 + $0x78] sm:$0xff]
        %v239 = vld [vmem:[%s2] sm:$0x1]
        %v241 = vlaneseq
        %v242 = vshrl.u32 %v241, 7
        %v243 = vsub.s32 0, %v242
        %v244 = vrot.slane %v239, %v243
        %246 = vmatprep.subr.mxu0 0.0
        %247 = vmatpush1.msra.mxu0 %v223
        %248 = vmatprep.subr.mxu0 0.0
        %249 = vmatpush1.msra.mxu0 %v224
        %250 = vmatprep.subr.mxu0 0.0
        %251 = vmatpush1.msra.mxu0 %v225
        %252 = vmatprep.subr.mxu0 0.0
        %253 = vmatpush1.msra.mxu0 %v226
        %254 = vmatprep.subr.mxu0 0.0
        %255 = vmatpush1.msra.mxu0 %v227
        %256 = vmatprep.subr.mxu0 0.0
        %257 = vmatpush1.msra.mxu0 %v228
        %258 = vmatprep.subr.mxu0 0.0
        %259 = vmatpush1.msra.mxu0 %v229
        %260 = vmatprep.subr.mxu0 0.0
        %261 = vmatpush1.msra.mxu0 %v230
        %262 = vmatprep.subr.mxu0 0.0
        %263 = vmatpush1.msra.mxu0 %v231
        %264 = vmatprep.subr.mxu0 0.0
        %265 = vmatpush1.msra.mxu0 %v232
        %266 = vmatprep.subr.mxu0 0.0
        %267 = vmatpush1.msra.mxu0 %v233
        %268 = vmatprep.subr.mxu0 0.0
        %269 = vmatpush1.msra.mxu0 %v234
        %270 = vmatprep.subr.mxu0 0.0
        %271 = vmatpush1.msra.mxu0 %v235
        %272 = vmatprep.subr.mxu0 0.0
        %273 = vmatpush1.msra.mxu0 %v236
        %274 = vmatprep.subr.mxu0 0.0
        %275 = vmatpush1.msra.mxu0 %v237
        %276 = vmatprep.subr.mxu0 0.0
        %277 = vmatpush1.msra.mxu0 %v238
        %278 = vmatprep.subr.mxu0 0.0
        %279 = vmatpush1.msra.mxu0 0.0
        %280 = vmatprep.subr.mxu0 0.0
        %281 = vmatpush1.msra.mxu0 0.0
        %282 = vmatprep.subr.mxu0 0.0
        %283 = vmatpush1.msra.mxu0 0.0
        %284 = vmatprep.subr.mxu0 0.0
        %285 = vmatpush1.msra.mxu0 0.0
        %286 = vmatprep.subr.mxu0 0.0
        %287 = vmatpush1.msra.mxu0 0.0
        %288 = vmatprep.subr.mxu0 0.0
        %289 = vmatpush1.msra.mxu0 0.0
        %290 = vmatprep.subr.mxu0 0.0
        %291 = vmatpush1.msra.mxu0 0.0
        %292 = vmatprep.subr.mxu0 0.0
        %293 = vmatpush1.msra.mxu0 0.0
        %294 = vmatprep.subr.mxu0 0.0
        %295 = vmatpush1.msra.mxu0 0.0
        %296 = vmatprep.subr.mxu0 0.0
        %297 = vmatpush1.msra.mxu0 0.0
        %298 = vmatprep.subr.mxu0 0.0
        %299 = vmatpush1.msra.mxu0 0.0
        %300 = vmatprep.subr.mxu0 0.0
        %301 = vmatpush1.msra.mxu0 0.0
        %302 = vmatprep.subr.mxu0 0.0
        %303 = vmatpush1.msra.mxu0 0.0
        %304 = vmatprep.subr.mxu0 0.0
        %305 = vmatpush1.msra.mxu0 0.0
        %306 = vmatprep.subr.mxu0 0.0
        %307 = vmatpush1.msra.mxu0 0.0
        %308 = vmatprep.subr.mxu0 0.0
        %309 = vmatpush1.msra.mxu0 0.0
        %310 = vmatprep.mubr.f32.mxu0 0.0
        %311 = vmatmul.mubr.f32.gmra.mrb[0].mxu0 %v210
        %v312 = vpop.f32.mrb[0].mxu0
        %v313 = vadd.f32 %v244, %v312
        %v314 = vpop.f32.mrb[0].mxu0
        %315 = vmatprep.mubr.f32.mxu0 0.0
        %316 = vmatmul.mubr.f32.gmra.mrb[0].mxu0 %v211
        %v317 = vpop.f32.mrb[0].mxu0
        %v318 = vadd.f32 %v244, %v317
        %v319 = vpop.f32.mrb[0].mxu0
        %320 = vmatprep.mubr.f32.mxu0 0.0
        %321 = vmatmul.mubr.f32.gmra.mrb[0].mxu0 %v212
        %v322 = vpop.f32.mrb[0].mxu0
        %v323 = vadd.f32 %v244, %v322
        %v324 = vpop.f32.mrb[0].mxu0
        %325 = vmatprep.mubr.f32.mxu0 0.0
        %326 = vmatmul.mubr.f32.gmra.mrb[0].mxu0 %v213
        %v327 = vpop.f32.mrb[0].mxu0
        %v328 = vadd.f32 %v244, %v327
        %v329 = vpop.f32.mrb[0].mxu0
        %330 = vmatprep.mubr.f32.mxu0 0.0
        %331 = vmatmul.mubr.f32.gmra.mrb[0].mxu0 %v214
        %v332 = vpop.f32.mrb[0].mxu0
        %v333 = vadd.f32 %v244, %v332
        %v334 = vpop.f32.mrb[0].mxu0
        %335 = vmatprep.mubr.f32.mxu0 0.0
        %336 = vmatmul.mubr.f32.gmra.mrb[0].mxu0 %v215
        %v337 = vpop.f32.mrb[0].mxu0
        %v338 = vadd.f32 %v244, %v337
        %v339 = vpop.f32.mrb[0].mxu0
        %340 = vmatprep.mubr.f32.mxu0 0.0
        %341 = vmatmul.mubr.f32.gmra.mrb[0].mxu0 %v216
        %v342 = vpop.f32.mrb[0].mxu0
        %v343 = vadd.f32 %v244, %v342
        %v344 = vpop.f32.mrb[0].mxu0
        %345 = vmatprep.mubr.f32.mxu0 0.0
        %346 = vmatmul.mubr.f32.gmra.mrb[0].mxu0 %v217
        %v347 = vpop.f32.mrb[0].mxu0
        %v348 = vadd.f32 %v244, %v347
        %v349 = vpop.f32.mrb[0].mxu0
        %350 = vmatprep.mubr.f32.mxu0 0.0
        %351 = vmatmul.mubr.f32.gmra.mrb[0].mxu0 %v218
        %v352 = vpop.f32.mrb[0].mxu0
        %v353 = vadd.f32 %v244, %v352
        %v354 = vpop.f32.mrb[0].mxu0
        %355 = vmatprep.mubr.f32.mxu0 0.0
        %356 = vmatmul.mubr.f32.gmra.mrb[0].mxu0 %v219
        %v357 = vpop.f32.mrb[0].mxu0
        %v358 = vadd.f32 %v244, %v357
        %v359 = vpop.f32.mrb[0].mxu0
        %360 = vmatprep.mubr.f32.mxu0 0.0
        %361 = vmatmul.mubr.f32.gmra.mrb[0].mxu0 %v220
        %v362 = vpop.f32.mrb[0].mxu0
        %v363 = vadd.f32 %v244, %v362
        %v364 = vpop.f32.mrb[0].mxu0
        %365 = vmatprep.mubr.f32.mxu0 0.0
        %366 = vmatmul.mubr.f32.gmra.mrb[0].mxu0 %v221
        %v367 = vpop.f32.mrb[0].mxu0
        %v368 = vadd.f32 %v244, %v367
        %v369 = vpop.f32.mrb[0].mxu0
        %370 = vmatprep.mubr.f32.mxu0 0.0
        %371 = vmatmul.mubr.f32.gmra.mrb[0].mxu0 %v222
        %v372 = vpop.f32.mrb[0].mxu0
        %v373 = vadd.f32 %v244, %v372
        %v374 = vpop.f32.mrb[0].mxu0
        %375 = vdwg.mxu0
        %376 = vst [vmem:[%s190] sm:$0xff] %v313
        %377 = vst [vmem:[%s190 + $0x8] sm:$0xff] %v318
        %378 = vst [vmem:[%s190 + $0x10] sm:$0xff] %v323
        %379 = vst [vmem:[%s190 + $0x18] sm:$0xff] %v328
        %380 = vst [vmem:[%s190 + $0x20] sm:$0xff] %v333
        %381 = vst [vmem:[%s190 + $0x28] sm:$0xff] %v338
        %382 = vst [vmem:[%s190 + $0x30] sm:$0xff] %v343
        %383 = vst [vmem:[%s190 + $0x38] sm:$0xff] %v348
        %384 = vst [vmem:[%s190 + $0x40] sm:$0xff] %v353
        %385 = vst [vmem:[%s190 + $0x48] sm:$0xff] %v358
        %386 = vst [vmem:[%s190 + $0x50] sm:$0xff] %v363
        %387 = vst [vmem:[%s190 + $0x58] sm:$0xff] %v368
        %388 = vst [vmem:[%s190 + $0x60] sm:$0xff] %v373
        %s389 = sand.u32 %s107, 1
        %s390 = scalar_lea.sflag [#allocation3], %s389
        %s391 = sand.u32 %s107, 1
        %s392 = smul.addr %s391, 104
        %s393 = scalar_lea.vmem [#allocation2], %s392
        // Predicated region
        $region33: #{odeblock_forward.1} parent=31 // pred_check
          %p394 = pneg %p117
        $region34: #{odeblock_forward.1} parent=31 // pred_check_branch
          %396 = sbr.rel (%p394) target = $region36
        $region35: #{odeblock_forward.1} parent=31 // pred_region
          %s397 = smul.u32 13, %s21
          %s398 = ssub.s32 25, %s397
          %p399 = scmp.lt.s32.totalorder %s398, 13
          %s400 = scalar_select %p399, %s398, 13
          %s401 = smul.u32 128, %s400
          %s403 = ssub.s32 1664, %s401
          %404 = vsyncadd %s390, %s403
          %p405 = scmp.ne.s32.totalorder 0, %s401
          %s406 = sadd.s32 %s22, %s397
          %s407 = smul.addr %s406, 128
          %s408 = scalar_lea.hbm %s3, %s407
          %s409 = smul.u32 8, %s400
          %s410 = sshll.u32 %s393, 4
          %s411 = int_to_ptr.vmem [resolvable:$true] %s410
          %s412 = sshll.u32 %s409, 4
          %416 = dma.vmem_to_hbm [thread:$0]  (%p405), %s411, %s412, %s408, %s390, 128, 128, 8
        $region36: #{odeblock_forward.1} parent=31 // pred_fallthru
          _
      $region32: #{odeblock_forward.1} parent=5 // pred_fallthru
        _
      %p417 = scmp.le.s32.totalorder 2, %s12
      // Predicated region
      $region37: #{odeblock_forward.1} parent=5 // pred_check
        %p418 = pneg %p417
      $region38: #{odeblock_forward.1} parent=5 // pred_check_branch
        %420 = sbr.rel (%p418) target = $region40
      $region39: #{odeblock_forward.1} parent=5 // pred_region
        %s421 = ssub.s32 %s12, 2
        // Predicated region
        $region41: #{odeblock_forward.1} parent=39 // pred_check
          %p422 = pneg %p123
        $region42: #{odeblock_forward.1} parent=39 // pred_check_branch
          %424 = sbr.rel (%p422) target = $region44
        $region43: #{odeblock_forward.1} parent=39 // pred_region
          %s425 = sand.u32 %s108, 1
          %s426 = scalar_lea.sflag [#allocation3], %s425
          %s427 = sand.u32 %s108, 1
          %s428 = smul.addr %s427, 104
          %s429 = scalar_lea.vmem [#allocation2], %s428
          %430 = dma.done %s426, 1664
        $region44: #{odeblock_forward.1} parent=39 // pred_fallthru
          _
      $region40: #{odeblock_forward.1} parent=5 // pred_fallthru
        _
    $region6: #{odeblock_forward.1} parent=1 // loop_footer
      %s16 = sadd.s32 1, %s12
    $region7: #{odeblock_forward.1} parent=1 // loop_footer_branch
      %11 = sbr.rel target = $region3
    $region8: #{odeblock_forward.1} parent=1 // loop_exit
      _
    %431 = vsyncpa [#allocation3], 1
    %s432 = scalar_lea.sflag [#allocation3], 1
    %433 = vsyncpa %s432, 1

</llo_original>
